<compile_context>
chip_gen: v6e
topology: v6e:2x2x1
jax: 0.10.0
libtpu: 0.0.40
codegen_flags: <defaults>
</compile_context>

<pallas_src>
import jax
import jax.numpy as jnp
from jax.experimental import pallas as pl
from jax.experimental.pallas import tpu as pltpu

LANE = 128      # TPU lane width (last-dim alignment for lane-dense tiles).
SUBLANE = 8     # TPU sublane width (second-to-last dim alignment).


def _round_up(n, m):
    return ((n + m - 1) // m) * m


def _cdiv(a, b):
    return (a + b - 1) // b


def qnetwork_kernel(x_ref, w1_ref, b1_ref, w2_ref, b2_ref, w3_ref, b3_ref, out_ref):
    # Biases are 2-D (1, padded) and loaded once; they broadcast over batch rows.
    b1 = b1_ref[...]
    b2 = b2_ref[...]
    b3 = b3_ref[...]

    x = x_ref[...]
    # Layer 1: Linear(state -> hidden) + ReLU   (weights pre-transposed: [in, out])
    h1 = jnp.dot(x, w1_ref[...], preferred_element_type=jnp.float32)
    h1 = jnp.maximum(h1 + b1, 0.0)
    # Layer 2: Linear(hidden -> hidden) + ReLU
    h2 = jnp.dot(h1, w2_ref[...], preferred_element_type=jnp.float32)
    h2 = jnp.maximum(h2 + b2, 0.0)
    # Layer 3: Linear(hidden -> action), no activation
    q = jnp.dot(h2, w3_ref[...], preferred_element_type=jnp.float32) + b3
    out_ref[...] = q.astype(out_ref.dtype)


def init_params(key, state_size, action_size, hidden_size=64):
    """PyTorch-style init: weights [out, in], uniform(-1/sqrt(fan_in), 1/sqrt(fan_in))."""
    ks = jax.random.split(key, 6)

    def linear_init(kw, kb, fan_in, fan_out):
        bound = 1.0 / jnp.sqrt(jnp.float32(fan_in))
        w = jax.random.uniform(kw, (fan_out, fan_in), jnp.float32, -bound, bound)
        b = jax.random.uniform(kb, (fan_out,), jnp.float32, -bound, bound)
        return w, b

    w1, b1 = linear_init(ks[0], ks[1], state_size, hidden_size)
    w2, b2 = linear_init(ks[2], ks[3], hidden_size, hidden_size)
    w3, b3 = linear_init(ks[4], ks[5], hidden_size, action_size)
    return {"w1": w1, "b1": b1, "w2": w2, "b2": b2, "w3": w3, "b3": b3}


def prepare_padded_params(params, lane_dense_out=True):
    """Pre-transpose weights to [in, out] and pad feature dims.

    * state (contraction) dim: padded only to a multiple of 8 sublanes (not 128).
    * hidden dim: padded to 128 lanes (MXU / lane-dense tiles).
    * action dim: padded to 128 lanes if lane_dense_out (unmasked stores), else
      left at its true size (narrow masked stores, ~32x fewer HBM write bytes).

    Zero-padding is exact: padded hidden units get zero weight + zero bias, ReLU
    keeps them at 0 and they contribute nothing downstream; padded output columns
    (if any) are sliced off by the wrapper.
    """
    w1, b1 = params["w1"], params["b1"]
    w2, b2 = params["w2"], params["b2"]
    w3, b3 = params["w3"], params["b3"]
    state_size = w1.shape[1]
    hidden_size = w1.shape[0]
    action_size = w3.shape[0]

    sp = _round_up(state_size, SUBLANE)                 # sublane-only padding
    hp = _round_up(hidden_size, LANE)
    ap = _round_up(action_size, LANE) if lane_dense_out else action_size

    def pad_wt(w, in_pad, out_pad):
        wt = w.T  # [in, out] — transpose done once, outside the kernel.
        return jnp.pad(wt, ((0, in_pad - wt.shape[0]), (0, out_pad - wt.shape[1])))

    def pad_b(b, out_pad):
        return jnp.pad(b, (0, out_pad - b.shape[0])).reshape(1, out_pad)

    padded = {
        "w1t": pad_wt(w1, sp, hp), "b1": pad_b(b1, hp),
        "w2t": pad_wt(w2, hp, hp), "b2": pad_b(b2, hp),
        "w3t": pad_wt(w3, hp, ap), "b3": pad_b(b3, ap),
    }
    dims = {"state": state_size, "hidden": hidden_size, "action": action_size,
            "sp": sp, "hp": hp, "ap": ap}
    return padded, dims


def _choose_batch_tiling(batch, max_tile=2048):
    """Pick (tile_b, batch_pad, n_steps) so tile_b * n_steps == batch_pad exactly.

    * tile_b capped at 2048 rows to amortize the ~0.35 us per-grid-step overhead.
    * >=2 grid steps whenever there is enough work (>=16 rows) so the "parallel"
      batch axis shards across both TensorCores on v7x.
    * tile_b divides batch_pad exactly -> no near-2x overshoot for odd batches.
    """
    batch8 = _round_up(max(batch, 1), SUBLANE)
    n_steps = _cdiv(batch8, max_tile)
    if batch8 >= 2 * SUBLANE:
        n_steps = max(n_steps, 2)
    tile_b = _round_up(_cdiv(batch8, n_steps), SUBLANE)
    batch_pad = tile_b * n_steps
    return tile_b, batch_pad, n_steps


def qnetwork_forward(x, padded, dims):
    """x: [batch, state_size] float32 -> [batch, action_size] float32."""
    batch = x.shape[0]
    sp, hp, ap = dims["sp"], dims["hp"], dims["ap"]
    state_size, action_size = dims["state"], dims["action"]

    tile_b, batch_pad, n_steps = _choose_batch_tiling(batch)

    # Only pad x when actually needed (state already sublane-aligned is common),
    # avoiding an extra full HBM pass over the input in the wrapper.
    if batch_pad != batch or sp != state_size:
        xp = jnp.pad(x, ((0, batch_pad - batch), (0, sp - state_size)))
    else:
        xp = x

    w1t, b1 = padded["w1t"], padded["b1"]
    w2t, b2 = padded["w2t"], padded["b2"]
    w3t, b3 = padded["w3t"], padded["b3"]

    # Tight VMEM budget: double-buffered x/out tiles + (double-buffered) resident
    # weights/biases + f32 intermediates + small headroom.  Stays ~2-16 MiB even
    # at tile_b=2048, well under v7x's 64 MiB and v5e/v6e's 128 MiB.
    io_bytes = 4 * 2 * tile_b * (sp + ap)
    weight_bytes = 4 * 2 * (w1t.size + w2t.size + w3t.size + b1.size + b2.size + b3.size)
    interm_bytes = 4 * tile_b * (2 * hp + ap)
    vmem_limit = max(io_bytes + weight_bytes + interm_bytes + (4 << 20), 8 << 20)

    out = pl.pallas_call(
        qnetwork_kernel,
        out_shape=jax.ShapeDtypeStruct((batch_pad, ap), x.dtype),
        grid_spec=pltpu.PrefetchScalarGridSpec(
            num_scalar_prefetch=0,
            grid=(n_steps,),
            in_specs=[
                pl.BlockSpec((tile_b, sp), lambda i: (i, 0)),   # x: tiled over batch
                pl.BlockSpec((sp, hp), lambda i: (0, 0)),       # w1t: VMEM-resident
                pl.BlockSpec((1, hp), lambda i: (0, 0)),        # b1
                pl.BlockSpec((hp, hp), lambda i: (0, 0)),       # w2t
                pl.BlockSpec((1, hp), lambda i: (0, 0)),        # b2
                pl.BlockSpec((hp, ap), lambda i: (0, 0)),       # w3t
                pl.BlockSpec((1, ap), lambda i: (0, 0)),        # b3
            ],
            out_specs=pl.BlockSpec((tile_b, ap), lambda i: (i, 0)),
        ),
        compiler_params=pltpu.CompilerParams(
            dimension_semantics=("parallel",),
            vmem_limit_bytes=int(vmem_limit),
        ),
    )(xp, w1t, b1, w2t, b2, w3t, b3)

    return out[:batch, :action_size]


def reference_forward(x, p):
    h1 = jnp.maximum(x @ p["w1"].T + p["b1"], 0.0)
    h2 = jnp.maximum(h1 @ p["w2"].T + p["b2"], 0.0)
    return h2 @ p["w3"].T + p["b3"]


if __name__ == "__main__":
    key = jax.random.PRNGKey(0)
    k_params, k_x = jax.random.split(key)

    batch, state_size, action_size = 2, 8, 4
    params = init_params(k_params, state_size, action_size)
    padded, dims = prepare_padded_params(params, lane_dense_out=True)
    x = jax.random.normal(k_x, (batch, state_size), jnp.float32)

    out = qnetwork_forward(x, padded, dims)
    out = jax.block_until_ready(out)

    ref = reference_forward(x, params)
    assert out.shape == (batch, action_size)
    assert jnp.allclose(out, ref, atol=1e-5, rtol=1e-5), "mismatch vs reference"
    print("KERNEL_OK")
</pallas_src>

<mosaic_0001>
module attributes {stable_mosaic.version = 11 : i64} {
  func.func @qnetwork_kernel(%arg0: i32, %arg1: memref<8x8xf32, #tpu.memory_space<vmem>>, %arg2: memref<8x128xf32, #tpu.memory_space<vmem>>, %arg3: memref<1x128xf32, #tpu.memory_space<vmem>>, %arg4: memref<128x128xf32, #tpu.memory_space<vmem>>, %arg5: memref<1x128xf32, #tpu.memory_space<vmem>>, %arg6: memref<128x128xf32, #tpu.memory_space<vmem>>, %arg7: memref<1x128xf32, #tpu.memory_space<vmem>>, %arg8: memref<8x128xf32, #tpu.memory_space<vmem>>) attributes {dimension_semantics = [#tpu.dimension_semantics<parallel>], iteration_bounds = array<i64: 1>, scalar_prefetch = 0 : i64, scratch_operands = 0 : i64, tpu.core_type = #tpu.core_type<tc>, window_params = [{transform_indices = @transform_0, window_bounds = array<i64: 8, 8>}, {pipeline_mode = #tpu.pipeline_mode<synchronous>, transform_indices = @transform_1, window_bounds = array<i64: 8, 128>}, {pipeline_mode = #tpu.pipeline_mode<synchronous>, transform_indices = @transform_2, window_bounds = array<i64: 1, 128>}, {pipeline_mode = #tpu.pipeline_mode<synchronous>, transform_indices = @transform_3, window_bounds = array<i64: 128, 128>}, {pipeline_mode = #tpu.pipeline_mode<synchronous>, transform_indices = @transform_4, window_bounds = array<i64: 1, 128>}, {pipeline_mode = #tpu.pipeline_mode<synchronous>, transform_indices = @transform_5, window_bounds = array<i64: 128, 128>}, {pipeline_mode = #tpu.pipeline_mode<synchronous>, transform_indices = @transform_6, window_bounds = array<i64: 1, 128>}, {transform_indices = @transform_7, window_bounds = array<i64: 8, 128>}]} {
    %c0 = arith.constant 0 : index
    %c0_0 = arith.constant 0 : index
    %0 = vector.load %arg3[%c0, %c0_0] : memref<1x128xf32, #tpu.memory_space<vmem>>, vector<1x128xf32>
    %c0_1 = arith.constant 0 : index
    %c0_2 = arith.constant 0 : index
    %1 = vector.load %arg5[%c0_1, %c0_2] : memref<1x128xf32, #tpu.memory_space<vmem>>, vector<1x128xf32>
    %c0_3 = arith.constant 0 : index
    %c0_4 = arith.constant 0 : index
    %2 = vector.load %arg7[%c0_3, %c0_4] : memref<1x128xf32, #tpu.memory_space<vmem>>, vector<1x128xf32>
    %c0_5 = arith.constant 0 : index
    %c0_6 = arith.constant 0 : index
    %3 = vector.load %arg1[%c0_5, %c0_6] : memref<8x8xf32, #tpu.memory_space<vmem>>, vector<8x8xf32>
    %c0_7 = arith.constant 0 : index
    %c0_8 = arith.constant 0 : index
    %4 = vector.load %arg2[%c0_7, %c0_8] : memref<8x128xf32, #tpu.memory_space<vmem>>, vector<8x128xf32>
    %cst = arith.constant dense<0.000000e+00> : vector<8x128xf32>
    %5 = tpu.matmul %3, %4, %cst {dimension_numbers = #tpu.dot_dimension_numbers<[1], [0], [0], [1], [0, 0, 1, 1], [], []>} : vector<8x8xf32>, vector<8x128xf32>, vector<8x128xf32> -> vector<8x128xf32>
    %6 = vector.broadcast %0 : vector<1x128xf32> to vector<8x128xf32>
    %7 = arith.addf %5, %6 : vector<8x128xf32>
    %cst_9 = arith.constant 0.000000e+00 : f32
    %8 = vector.broadcast %cst_9 : f32 to vector<8x128xf32>
    %9 = arith.maximumf %7, %8 : vector<8x128xf32>
    %c0_10 = arith.constant 0 : index
    %c0_11 = arith.constant 0 : index
    %10 = vector.load %arg4[%c0_10, %c0_11] : memref<128x128xf32, #tpu.memory_space<vmem>>, vector<128x128xf32>
    %cst_12 = arith.constant dense<0.000000e+00> : vector<8x128xf32>
    %11 = tpu.matmul %9, %10, %cst_12 {dimension_numbers = #tpu.dot_dimension_numbers<[1], [0], [0], [1], [0, 0, 1, 1], [], []>} : vector<8x128xf32>, vector<128x128xf32>, vector<8x128xf32> -> vector<8x128xf32>
    %12 = vector.broadcast %1 : vector<1x128xf32> to vector<8x128xf32>
    %13 = arith.addf %11, %12 : vector<8x128xf32>
    %cst_13 = arith.constant 0.000000e+00 : f32
    %14 = vector.broadcast %cst_13 : f32 to vector<8x128xf32>
    %15 = arith.maximumf %13, %14 : vector<8x128xf32>
    %c0_14 = arith.constant 0 : index
    %c0_15 = arith.constant 0 : index
    %16 = vector.load %arg6[%c0_14, %c0_15] : memref<128x128xf32, #tpu.memory_space<vmem>>, vector<128x128xf32>
    %cst_16 = arith.constant dense<0.000000e+00> : vector<8x128xf32>
    %17 = tpu.matmul %15, %16, %cst_16 {dimension_numbers = #tpu.dot_dimension_numbers<[1], [0], [0], [1], [0, 0, 1, 1], [], []>} : vector<8x128xf32>, vector<128x128xf32>, vector<8x128xf32> -> vector<8x128xf32>
    %18 = vector.broadcast %2 : vector<1x128xf32> to vector<8x128xf32>
    %19 = arith.addf %17, %18 : vector<8x128xf32>
    %c0_17 = arith.constant 0 : index
    %c0_18 = arith.constant 0 : index
    %20 = vector.load %arg8[%c0_17, %c0_18] : memref<8x128xf32, #tpu.memory_space<vmem>>, vector<8x128xf32>
    tpu.vector_store %arg8[%c0_17, %c0_18], %19 {strides = array<i32>} : memref<8x128xf32, #tpu.memory_space<vmem>>, vector<8x128xf32>,
    return
  }
  func.func @transform_0(%arg0: i32) -> (i32, i32) {
    %c0_i32 = arith.constant 0 : i32
    %c0_i32_0 = arith.constant 0 : i32
    return %arg0, %c0_i32 : i32, i32
  }
  func.func @transform_1(%arg0: i32) -> (i32, i32) {
    %c0_i32 = arith.constant 0 : i32
    %c0_i32_0 = arith.constant 0 : i32
    %c0_i32_1 = arith.constant 0 : i32
    return %c0_i32, %c0_i32_0 : i32, i32
  }
  func.func @transform_2(%arg0: i32) -> (i32, i32) {
    %c0_i32 = arith.constant 0 : i32
    %c0_i32_0 = arith.constant 0 : i32
    %c0_i32_1 = arith.constant 0 : i32
    return %c0_i32, %c0_i32_0 : i32, i32
  }
  func.func @transform_3(%arg0: i32) -> (i32, i32) {
    %c0_i32 = arith.constant 0 : i32
    %c0_i32_0 = arith.constant 0 : i32
    %c0_i32_1 = arith.constant 0 : i32
    return %c0_i32, %c0_i32_0 : i32, i32
  }
  func.func @transform_4(%arg0: i32) -> (i32, i32) {
    %c0_i32 = arith.constant 0 : i32
    %c0_i32_0 = arith.constant 0 : i32
    %c0_i32_1 = arith.constant 0 : i32
    return %c0_i32, %c0_i32_0 : i32, i32
  }
  func.func @transform_5(%arg0: i32) -> (i32, i32) {
    %c0_i32 = arith.constant 0 : i32
    %c0_i32_0 = arith.constant 0 : i32
    %c0_i32_1 = arith.constant 0 : i32
    return %c0_i32, %c0_i32_0 : i32, i32
  }
  func.func @transform_6(%arg0: i32) -> (i32, i32) {
    %c0_i32 = arith.constant 0 : i32
    %c0_i32_0 = arith.constant 0 : i32
    %c0_i32_1 = arith.constant 0 : i32
    return %c0_i32, %c0_i32_0 : i32, i32
  }
  func.func @transform_7(%arg0: i32) -> (i32, i32) {
    %c0_i32 = arith.constant 0 : i32
    %c0_i32_0 = arith.constant 0 : i32
    return %arg0, %c0_i32 : i32, i32
  }
}

</mosaic_0001>

<llo_original>
// kernel: tpu_custom_call.1
$region0: #{tpu_custom_call.1}
  #allocation0 [shape = 'u32[]', space=smem, size = 0x4, offset = 0x4, fixed_abs, tag = 'smem constant byte address 0x4 - core index']
  #allocation1 [shape = 'u32[144,128]{1,0:T(1,128)}', space=vmem, size = 0x12000, scoped, tag = 'internal scratch']
  %s0 = inlined_call_operand.hbm [shape: f32[8,8], index: 0, kind: input, shape index: {}]
  %s1 = inlined_call_operand.hbm [shape: f32[8,128], index: 1, kind: input, shape index: {}]
  %s2 = inlined_call_operand.vmem [shape: f32[1,128], index: 2, kind: input, shape index: {}]
  %s3 = inlined_call_operand.hbm [shape: f32[128,128], index: 3, kind: input, shape index: {}]
  %s4 = inlined_call_operand.vmem [shape: f32[1,128], index: 4, kind: input, shape index: {}]
  %s5 = inlined_call_operand.hbm [shape: f32[128,128], index: 5, kind: input, shape index: {}]
  %s6 = inlined_call_operand.vmem [shape: f32[1,128], index: 6, kind: input, shape index: {}]
  %s7 = inlined_call_operand.hbm [shape: f32[8,128], index: 7, kind: output, shape index: {}]
  %s8 = sld [smem:[#allocation0]]
  $region54: #{tpu_custom_call.1} parent=0
    _
  %s10 = ssub.s32 1, %s8
  %s11 = scalar_select 0, %s10, %s8
  $region1: #{tpu_custom_call.1} parent=0
    #allocation2 [shape = 'u8[4096]{0}', space=vmem, size = 0x1000, scoped, tag = 'input window, operand 0, single buffered']
    #allocation3 [shape = 's32[1]{0}', space=sflag, size = 0x4, scoped, tag = 'scoped memory for tpu_custom_call.1']
    #allocation4 [shape = 's32[1]{0}', space=sflag, size = 0x4, scoped, tag = 'scoped memory for tpu_custom_call.1']
    #allocation5 [shape = 'u8[4096]{0}', space=vmem, size = 0x1000, scoped, tag = 'input window, operand 1, single buffered']
    #allocation6 [shape = 's32[1]{0}', space=sflag, size = 0x4, scoped, tag = 'scoped memory for tpu_custom_call.1']
    #allocation7 [shape = 'u8[65536]{0}', space=vmem, size = 0x10000, scoped, tag = 'input window, operand 3, single buffered']
    #allocation8 [shape = 'u8[65536]{0}', space=vmem, size = 0x10000, scoped, tag = 'input window, operand 5, single buffered']
    #allocation9 [shape = 's32[1]{0}', space=sflag, size = 0x4, scoped, tag = 'scoped memory for tpu_custom_call.1']
    #allocation10 [shape = 'u8[4096]{0}', space=vmem, size = 0x1000, scoped, tag = 'output window, operand 0, single buffered']
    %12 = vsyncpa [#allocation3], 0
    %13 = vsyncpa [#allocation6], 0
    %14 = vsyncpa [#allocation9], 0
    %15 = vsyncpa [#allocation4], 0
    // Predicated region
    $region2: #{tpu_custom_call.1} parent=1 // pred_check
      _
    $region3: #{tpu_custom_call.1} parent=1 // pred_check_branch
      %17 = sbr.rel (0) target = $region5
    $region4: #{tpu_custom_call.1} parent=1 // pred_region
      %s19 = ssub.s32 128, 128
      %20 = vsyncadd [#allocation3], %s19
      %s22 = sshll.u32 [#allocation2], 4
      %s23 = int_to_ptr.vmem [resolvable:$true] %s22
      %25 = dma.hbm_to_vmem [thread:$0]  %s0, 128, %s23, [#allocation3]
    $region5: #{tpu_custom_call.1} parent=1 // pred_fallthru
      _
    // Predicated region
    $region6: #{tpu_custom_call.1} parent=1 // pred_check
      _
    $region7: #{tpu_custom_call.1} parent=1 // pred_check_branch
      %27 = sbr.rel (0) target = $region9
    $region8: #{tpu_custom_call.1} parent=1 // pred_region
      %s29 = ssub.s32 128, 128
      %30 = vsyncadd [#allocation6], %s29
      %s32 = sshll.u32 [#allocation5], 4
      %s33 = int_to_ptr.vmem [resolvable:$true] %s32
      %35 = dma.hbm_to_vmem [thread:$0]  %s1, 128, %s33, [#allocation6]
    $region9: #{tpu_custom_call.1} parent=1 // pred_fallthru
      _
    // Predicated region
    $region10: #{tpu_custom_call.1} parent=1 // pred_check
      _
    $region11: #{tpu_custom_call.1} parent=1 // pred_check_branch
      %37 = sbr.rel (0) target = $region13
    $region12: #{tpu_custom_call.1} parent=1 // pred_region
      _
    $region13: #{tpu_custom_call.1} parent=1 // pred_fallthru
      _
    // Predicated region
    $region14: #{tpu_custom_call.1} parent=1 // pred_check
      _
    $region15: #{tpu_custom_call.1} parent=1 // pred_check_branch
      %39 = sbr.rel (0) target = $region17
    $region16: #{tpu_custom_call.1} parent=1 // pred_region
      %s41 = ssub.s32 2048, 2048
      %42 = vsyncadd [#allocation6], %s41
      %s43 = sshll.u32 [#allocation7], 4
      %s44 = int_to_ptr.vmem [resolvable:$true] %s43
      %49 = dma.hbm_to_vmem [thread:$0]  %s3, 2048, %s44, [#allocation6], 128, 128, 8
    $region17: #{tpu_custom_call.1} parent=1 // pred_fallthru
      _
    // Predicated region
    $region18: #{tpu_custom_call.1} parent=1 // pred_check
      _
    $region19: #{tpu_custom_call.1} parent=1 // pred_check_branch
      %51 = sbr.rel (0) target = $region21
    $region20: #{tpu_custom_call.1} parent=1 // pred_region
      _
    $region21: #{tpu_custom_call.1} parent=1 // pred_fallthru
      _
    // Predicated region
    $region22: #{tpu_custom_call.1} parent=1 // pred_check
      _
    $region23: #{tpu_custom_call.1} parent=1 // pred_check_branch
      %53 = sbr.rel (0) target = $region25
    $region24: #{tpu_custom_call.1} parent=1 // pred_region
      %s55 = ssub.s32 2048, 2048
      %56 = vsyncadd [#allocation9], %s55
      %s57 = sshll.u32 [#allocation8], 4
      %s58 = int_to_ptr.vmem [resolvable:$true] %s57
      %63 = dma.hbm_to_vmem [thread:$0]  %s5, 2048, %s58, [#allocation9], 128, 128, 8
    $region25: #{tpu_custom_call.1} parent=1 // pred_fallthru
      _
    // Predicated region
    $region26: #{tpu_custom_call.1} parent=1 // pred_check
      _
    $region27: #{tpu_custom_call.1} parent=1 // pred_check_branch
      %65 = sbr.rel (0) target = $region29
    $region28: #{tpu_custom_call.1} parent=1 // pred_region
      _
    $region29: #{tpu_custom_call.1} parent=1 // pred_fallthru
      _
    // Predicated region
    $region30: #{tpu_custom_call.1} parent=1 // pred_check
      _
    $region31: #{tpu_custom_call.1} parent=1 // pred_check_branch
      %67 = sbr.rel (0) target = $region33
    $region32: #{tpu_custom_call.1} parent=1 // pred_region
      %68 = dma.done [#allocation3], 128
    $region33: #{tpu_custom_call.1} parent=1 // pred_fallthru
      _
    // Predicated region
    $region34: #{tpu_custom_call.1} parent=1 // pred_check
      _
    $region35: #{tpu_custom_call.1} parent=1 // pred_check_branch
      %70 = sbr.rel (0) target = $region37
    $region36: #{tpu_custom_call.1} parent=1 // pred_region
      %71 = dma.done [#allocation6], 128
    $region37: #{tpu_custom_call.1} parent=1 // pred_fallthru
      _
    // Predicated region
    $region38: #{tpu_custom_call.1} parent=1 // pred_check
      _
    $region39: #{tpu_custom_call.1} parent=1 // pred_check_branch
      %73 = sbr.rel (0) target = $region41
    $region40: #{tpu_custom_call.1} parent=1 // pred_region
      %74 = dma.done [#allocation6], 2048
    $region41: #{tpu_custom_call.1} parent=1 // pred_fallthru
      _
    // Predicated region
    $region42: #{tpu_custom_call.1} parent=1 // pred_check
      _
    $region43: #{tpu_custom_call.1} parent=1 // pred_check_branch
      %76 = sbr.rel (0) target = $region45
    $region44: #{tpu_custom_call.1} parent=1 // pred_region
      %77 = dma.done [#allocation9], 2048
    $region45: #{tpu_custom_call.1} parent=1 // pred_fallthru
      _
    %v78 = vld [vmem:[%s2] sm:$0x1]
    %v79 = vld [vmem:[%s4] sm:$0x1]
    %v80 = vld [vmem:[%s6] sm:$0x1]
    %v81 = vld [vmem:[#allocation2] sm:$0xff]
    %v82 = vld [vmem:[#allocation5] sm:$0xff]
    %v84 = vlaneseq
    %v85 = vshrl.u32 %v84, 7
    %v86 = vsub.s32 0, %v85
    %v87 = vrot.slane %v78, %v86
    %vm89 = vcmask 64512
    %v91 = vsel %vm89, %v81, 0
    %93 = vmatprep.subr.mxu0 0.0
    %94 = vmatpush1.msra.mxu0 0.0
    %95 = vmatprep.subr.mxu0 0.0
    %96 = vmatpush1.msra.mxu0 0.0
    %97 = vmatprep.subr.mxu0 0.0
    %98 = vmatpush1.msra.mxu0 0.0
    %99 = vmatprep.subr.mxu0 0.0
    %100 = vmatpush1.msra.mxu0 0.0
    %101 = vmatprep.subr.mxu0 0.0
    %102 = vmatpush1.msra.mxu0 0.0
    %103 = vmatprep.subr.mxu0 0.0
    %104 = vmatpush1.msra.mxu0 0.0
    %105 = vmatprep.subr.mxu0 0.0
    %106 = vmatpush1.msra.mxu0 0.0
    %107 = vmatprep.subr.mxu0 0.0
    %108 = vmatpush1.msra.mxu0 0.0
    %109 = vmatprep.subr.mxu0 0.0
    %110 = vmatpush1.msra.mxu0 0.0
    %111 = vmatprep.subr.mxu0 0.0
    %112 = vmatpush1.msra.mxu0 0.0
    %113 = vmatprep.subr.mxu0 0.0
    %114 = vmatpush1.msra.mxu0 0.0
    %115 = vmatprep.subr.mxu0 0.0
    %116 = vmatpush1.msra.mxu0 0.0
    %117 = vmatprep.subr.mxu0 0.0
    %118 = vmatpush1.msra.mxu0 0.0
    %119 = vmatprep.subr.mxu0 0.0
    %120 = vmatpush1.msra.mxu0 0.0
    %121 = vmatprep.subr.mxu0 0.0
    %122 = vmatpush1.msra.mxu0 0.0
    %123 = vmatprep.subr.mxu0 0.0
    %124 = vmatpush1.msra.mxu0 %v82
    %125 = vmatprep.subr.mxu0 0.0
    %126 = vmatpush2.msra.mxu0 0.0
    %127 = vmatprep.subr.mxu0 0.0
    %128 = vmatpush2.msra.mxu0 0.0
    %129 = vmatprep.subr.mxu0 0.0
    %130 = vmatpush2.msra.mxu0 0.0
    %131 = vmatprep.subr.mxu0 0.0
    %132 = vmatpush2.msra.mxu0 0.0
    %133 = vmatprep.subr.mxu0 0.0
    %134 = vmatpush2.msra.mxu0 0.0
    %135 = vmatprep.subr.mxu0 0.0
    %136 = vmatpush2.msra.mxu0 0.0
    %137 = vmatprep.subr.mxu0 0.0
    %138 = vmatpush2.msra.mxu0 0.0
    %139 = vmatprep.subr.mxu0 0.0
    %140 = vmatpush2.msra.mxu0 0.0
    %141 = vmatprep.subr.mxu0 0.0
    %142 = vmatpush2.msra.mxu0 0.0
    %143 = vmatprep.subr.mxu0 0.0
    %144 = vmatpush2.msra.mxu0 0.0
    %145 = vmatprep.subr.mxu0 0.0
    %146 = vmatpush2.msra.mxu0 0.0
    %147 = vmatprep.subr.mxu0 0.0
    %148 = vmatpush2.msra.mxu0 0.0
    %149 = vmatprep.subr.mxu0 0.0
    %150 = vmatpush2.msra.mxu0 0.0
    %151 = vmatprep.subr.mxu0 0.0
    %152 = vmatpush2.msra.mxu0 0.0
    %153 = vmatprep.subr.mxu0 0.0
    %154 = vmatpush2.msra.mxu0 0.0
    %155 = vmatprep.subr.mxu0 0.0
    %156 = vmatpush2.msra.mxu0 0.0
    %157 = vmatprep.mubr.f32.mxu0 0.0
    %158 = vmatmul.mubr.f32.gmra.mxu0 %v91
    %v159 = vpop.f32.mrf.mxu0
    %v160 = vadd.f32 %v87, %v159
    %v161 = vpop.f32.mrf.mxu0
    %162 = vdwg.mxu0
    %v163 = vmax.f32 %v160, 0.0
    %v164 = vld [vmem:[#allocation7] sm:$0xff]
    %v165 = vld [vmem:[#allocation7 + $0x8] sm:$0xff]
    %v166 = vld [vmem:[#allocation7 + $0x10] sm:$0xff]
    %v167 = vld [vmem:[#allocation7 + $0x18] sm:$0xff]
    %v168 = vld [vmem:[#allocation7 + $0x20] sm:$0xff]
    %v169 = vld [vmem:[#allocation7 + $0x28] sm:$0xff]
    %v170 = vld [vmem:[#allocation7 + $0x30] sm:$0xff]
    %v171 = vld [vmem:[#allocation7 + $0x38] sm:$0xff]
    %v172 = vld [vmem:[#allocation7 + $0x40] sm:$0xff]
    %v173 = vld [vmem:[#allocation7 + $0x48] sm:$0xff]
    %v174 = vld [vmem:[#allocation7 + $0x50] sm:$0xff]
    %v175 = vld [vmem:[#allocation7 + $0x58] sm:$0xff]
    %v176 = vld [vmem:[#allocation7 + $0x60] sm:$0xff]
    %v177 = vld [vmem:[#allocation7 + $0x68] sm:$0xff]
    %v178 = vld [vmem:[#allocation7 + $0x70] sm:$0xff]
    %v179 = vld [vmem:[#allocation7 + $0x78] sm:$0xff]
    %v181 = vlaneseq
    %v182 = vshrl.u32 %v181, 7
    %v183 = vsub.s32 0, %v182
    %v184 = vrot.slane %v79, %v183
    %186 = vmatprep.subr.mxu0 0.0
    %187 = vmatpush1.msra.mxu0 %v179
    %188 = vmatprep.subr.mxu0 0.0
    %189 = vmatpush1.msra.mxu0 %v178
    %190 = vmatprep.subr.mxu0 0.0
    %191 = vmatpush1.msra.mxu0 %v177
    %192 = vmatprep.subr.mxu0 0.0
    %193 = vmatpush1.msra.mxu0 %v176
    %194 = vmatprep.subr.mxu0 0.0
    %195 = vmatpush1.msra.mxu0 %v175
    %196 = vmatprep.subr.mxu0 0.0
    %197 = vmatpush1.msra.mxu0 %v174
    %198 = vmatprep.subr.mxu0 0.0
    %199 = vmatpush1.msra.mxu0 %v173
    %200 = vmatprep.subr.mxu0 0.0
    %201 = vmatpush1.msra.mxu0 %v172
    %202 = vmatprep.subr.mxu0 0.0
    %203 = vmatpush1.msra.mxu0 %v171
    %204 = vmatprep.subr.mxu0 0.0
    %205 = vmatpush1.msra.mxu0 %v170
    %206 = vmatprep.subr.mxu0 0.0
    %207 = vmatpush1.msra.mxu0 %v169
    %208 = vmatprep.subr.mxu0 0.0
    %209 = vmatpush1.msra.mxu0 %v168
    %210 = vmatprep.subr.mxu0 0.0
    %211 = vmatpush1.msra.mxu0 %v167
    %212 = vmatprep.subr.mxu0 0.0
    %213 = vmatpush1.msra.mxu0 %v166
    %214 = vmatprep.subr.mxu0 0.0
    %215 = vmatpush1.msra.mxu0 %v165
    %216 = vmatprep.subr.mxu0 0.0
    %217 = vmatpush1.msra.mxu0 %v164
    %218 = vmatprep.subr.mxu0 0.0
    %219 = vmatpush2.msra.mxu0 0.0
    %220 = vmatprep.subr.mxu0 0.0
    %221 = vmatpush2.msra.mxu0 0.0
    %222 = vmatprep.subr.mxu0 0.0
    %223 = vmatpush2.msra.mxu0 0.0
    %224 = vmatprep.subr.mxu0 0.0
    %225 = vmatpush2.msra.mxu0 0.0
    %226 = vmatprep.subr.mxu0 0.0
    %227 = vmatpush2.msra.mxu0 0.0
    %228 = vmatprep.subr.mxu0 0.0
    %229 = vmatpush2.msra.mxu0 0.0
    %230 = vmatprep.subr.mxu0 0.0
    %231 = vmatpush2.msra.mxu0 0.0
    %232 = vmatprep.subr.mxu0 0.0
    %233 = vmatpush2.msra.mxu0 0.0
    %234 = vmatprep.subr.mxu0 0.0
    %235 = vmatpush2.msra.mxu0 0.0
    %236 = vmatprep.subr.mxu0 0.0
    %237 = vmatpush2.msra.mxu0 0.0
    %238 = vmatprep.subr.mxu0 0.0
    %239 = vmatpush2.msra.mxu0 0.0
    %240 = vmatprep.subr.mxu0 0.0
    %241 = vmatpush2.msra.mxu0 0.0
    %242 = vmatprep.subr.mxu0 0.0
    %243 = vmatpush2.msra.mxu0 0.0
    %244 = vmatprep.subr.mxu0 0.0
    %245 = vmatpush2.msra.mxu0 0.0
    %246 = vmatprep.subr.mxu0 0.0
    %247 = vmatpush2.msra.mxu0 0.0
    %248 = vmatprep.subr.mxu0 0.0
    %249 = vmatpush2.msra.mxu0 0.0
    %250 = vmatprep.mubr.f32.mxu0 0.0
    %251 = vmatmul.mubr.f32.gmra.mxu0 %v163
    %v252 = vpop.f32.mrf.mxu0
    %v253 = vadd.f32 %v184, %v252
    %v254 = vpop.f32.mrf.mxu0
    %255 = vdwg.mxu0
    %v256 = vmax.f32 %v253, 0.0
    %v257 = vld [vmem:[#allocation8] sm:$0xff]
    %v258 = vld [vmem:[#allocation8 + $0x8] sm:$0xff]
    %v259 = vld [vmem:[#allocation8 + $0x10] sm:$0xff]
    %v260 = vld [vmem:[#allocation8 + $0x18] sm:$0xff]
    %v261 = vld [vmem:[#allocation8 + $0x20] sm:$0xff]
    %v262 = vld [vmem:[#allocation8 + $0x28] sm:$0xff]
    %v263 = vld [vmem:[#allocation8 + $0x30] sm:$0xff]
    %v264 = vld [vmem:[#allocation8 + $0x38] sm:$0xff]
    %v265 = vld [vmem:[#allocation8 + $0x40] sm:$0xff]
    %v266 = vld [vmem:[#allocation8 + $0x48] sm:$0xff]
    %v267 = vld [vmem:[#allocation8 + $0x50] sm:$0xff]
    %v268 = vld [vmem:[#allocation8 + $0x58] sm:$0xff]
    %v269 = vld [vmem:[#allocation8 + $0x60] sm:$0xff]
    %v270 = vld [vmem:[#allocation8 + $0x68] sm:$0xff]
    %v271 = vld [vmem:[#allocation8 + $0x70] sm:$0xff]
    %v272 = vld [vmem:[#allocation8 + $0x78] sm:$0xff]
    %v274 = vlaneseq
    %v275 = vshrl.u32 %v274, 7
    %v276 = vsub.s32 0, %v275
    %v277 = vrot.slane %v80, %v276
    %279 = vmatprep.subr.mxu0 0.0
    %280 = vmatpush1.msra.mxu0 %v272
    %281 = vmatprep.subr.mxu0 0.0
    %282 = vmatpush1.msra.mxu0 %v271
    %283 = vmatprep.subr.mxu0 0.0
    %284 = vmatpush1.msra.mxu0 %v270
    %285 = vmatprep.subr.mxu0 0.0
    %286 = vmatpush1.msra.mxu0 %v269
    %287 = vmatprep.subr.mxu0 0.0
    %288 = vmatpush1.msra.mxu0 %v268
    %289 = vmatprep.subr.mxu0 0.0
    %290 = vmatpush1.msra.mxu0 %v267
    %291 = vmatprep.subr.mxu0 0.0
    %292 = vmatpush1.msra.mxu0 %v266
    %293 = vmatprep.subr.mxu0 0.0
    %294 = vmatpush1.msra.mxu0 %v265
    %295 = vmatprep.subr.mxu0 0.0
    %296 = vmatpush1.msra.mxu0 %v264
    %297 = vmatprep.subr.mxu0 0.0
    %298 = vmatpush1.msra.mxu0 %v263
    %299 = vmatprep.subr.mxu0 0.0
    %300 = vmatpush1.msra.mxu0 %v262
    %301 = vmatprep.subr.mxu0 0.0
    %302 = vmatpush1.msra.mxu0 %v261
    %303 = vmatprep.subr.mxu0 0.0
    %304 = vmatpush1.msra.mxu0 %v260
    %305 = vmatprep.subr.mxu0 0.0
    %306 = vmatpush1.msra.mxu0 %v259
    %307 = vmatprep.subr.mxu0 0.0
    %308 = vmatpush1.msra.mxu0 %v258
    %309 = vmatprep.subr.mxu0 0.0
    %310 = vmatpush1.msra.mxu0 %v257
    %311 = vmatprep.subr.mxu0 0.0
    %312 = vmatpush2.msra.mxu0 0.0
    %313 = vmatprep.subr.mxu0 0.0
    %314 = vmatpush2.msra.mxu0 0.0
    %315 = vmatprep.subr.mxu0 0.0
    %316 = vmatpush2.msra.mxu0 0.0
    %317 = vmatprep.subr.mxu0 0.0
    %318 = vmatpush2.msra.mxu0 0.0
    %319 = vmatprep.subr.mxu0 0.0
    %320 = vmatpush2.msra.mxu0 0.0
    %321 = vmatprep.subr.mxu0 0.0
    %322 = vmatpush2.msra.mxu0 0.0
    %323 = vmatprep.subr.mxu0 0.0
    %324 = vmatpush2.msra.mxu0 0.0
    %325 = vmatprep.subr.mxu0 0.0
    %326 = vmatpush2.msra.mxu0 0.0
    %327 = vmatprep.subr.mxu0 0.0
    %328 = vmatpush2.msra.mxu0 0.0
    %329 = vmatprep.subr.mxu0 0.0
    %330 = vmatpush2.msra.mxu0 0.0
    %331 = vmatprep.subr.mxu0 0.0
    %332 = vmatpush2.msra.mxu0 0.0
    %333 = vmatprep.subr.mxu0 0.0
    %334 = vmatpush2.msra.mxu0 0.0
    %335 = vmatprep.subr.mxu0 0.0
    %336 = vmatpush2.msra.mxu0 0.0
    %337 = vmatprep.subr.mxu0 0.0
    %338 = vmatpush2.msra.mxu0 0.0
    %339 = vmatprep.subr.mxu0 0.0
    %340 = vmatpush2.msra.mxu0 0.0
    %341 = vmatprep.subr.mxu0 0.0
    %342 = vmatpush2.msra.mxu0 0.0
    %343 = vmatprep.mubr.f32.mxu0 0.0
    %344 = vmatmul.mubr.f32.gmra.mxu0 %v256
    %v345 = vpop.f32.mrf.mxu0
    %v346 = vadd.f32 %v277, %v345
    %v347 = vpop.f32.mrf.mxu0
    %348 = vdwg.mxu0
    %349 = vst [vmem:[#allocation10] sm:$0xff] %v346
    // Predicated region
    $region46: #{tpu_custom_call.1} parent=1 // pred_check
      _
    $region47: #{tpu_custom_call.1} parent=1 // pred_check_branch
      %351 = sbr.rel (0) target = $region49
    $region48: #{tpu_custom_call.1} parent=1 // pred_region
      %s353 = ssub.s32 128, 128
      %354 = vsyncadd [#allocation4], %s353
      %s356 = sshll.u32 [#allocation10], 4
      %s357 = int_to_ptr.vmem [resolvable:$true] %s356
      %359 = dma.vmem_to_hbm [thread:$0]  %s357, 128, %s7, [#allocation4]
    $region49: #{tpu_custom_call.1} parent=1 // pred_fallthru
      _
    // Predicated region
    $region50: #{tpu_custom_call.1} parent=1 // pred_check
      _
    $region51: #{tpu_custom_call.1} parent=1 // pred_check_branch
      %361 = sbr.rel (0) target = $region53
    $region52: #{tpu_custom_call.1} parent=1 // pred_region
      %362 = dma.done [#allocation4], 128
    $region53: #{tpu_custom_call.1} parent=1 // pred_fallthru
      _
    %363 = vsyncpa [#allocation3], 1
    %364 = vsyncpa [#allocation6], 1
    %365 = vsyncpa [#allocation9], 1
    %366 = vsyncpa [#allocation4], 1

</llo_original>
